<compile_context>
chip_gen: v7x
topology: tpu7x:2x2x1
jax: 0.10.0
libtpu: 0.0.40
codegen_flags: <defaults>
</compile_context>

<pallas_src>
import functools

import jax
import jax.numpy as jnp
from jax import lax
from jax.experimental import pallas as pl
from jax.experimental.pallas import tpu as pltpu


def _round_up(v, m):
    return -(-v // m) * m


def _vmem_capacity_bytes():
    """Physical per-core VMEM; conservative 64 MiB fallback (v7x minimum)."""
    try:
        cap = int(pltpu.get_tpu_info().vmem_capacity_bytes)
        if cap > 0:
            return cap
    except Exception:
        pass
    return 64 << 20


def _linear_logsoftmax_kernel(x_ref, w_ref, b_ref, o_ref):
    # x_ref : (tm, F)  VMEM -- row tile of the input
    # w_ref : (E, F)   VMEM -- full weight, native PyTorch layout (no transpose)
    # b_ref : (1, E)   VMEM -- bias row (f32)
    # o_ref : (tm, E)  VMEM -- log-softmax output tile
    y = lax.dot_general(
        x_ref[...], w_ref[...],
        dimension_numbers=(((1,), (1,)), ((), ())),   # x @ W^T on the MXU
        preferred_element_type=jnp.float32,
    )
    y = y + b_ref[...]                                # broadcast (1, E), f32
    m = jnp.max(y, axis=-1, keepdims=True)            # numerically stable
    z = y - m
    lse = jnp.log(jnp.sum(jnp.exp(z), axis=-1, keepdims=True))
    o_ref[...] = (z - lse).astype(o_ref.dtype)
    # TODO(synk): if this kernel ever becomes VPU/EUP/store-slot bound
    # (env_num << 128), switch to the transposed (E, tm) tile layout for
    # lane-dense unmasked stores; it is HBM-bound on x for realistic shapes.


@functools.partial(jax.jit, static_argnames=("tm",))
def linear_logsoftmax_env_classifier(x, weight, bias, *, tm=1024):
    """x: (batch, factor_dim); weight: (env_num, factor_dim); bias: (env_num,)."""
    batch, factor_dim = x.shape
    env_num = weight.shape[0]

    # ---- compute dtype: honor bf16 inputs (halves x HBM traffic), else f32 ----
    if x.dtype in (jnp.float32, jnp.bfloat16):
        cd = x.dtype
    else:
        cd = jnp.float32
    itemsize = 2 if cd == jnp.bfloat16 else 4
    xc = x.astype(cd)                                  # no-op when already cd
    wc = weight.astype(cd)                             # native (E, F), no .T pass
    b_row = bias.astype(jnp.float32).reshape(1, env_num)

    # ---- generation-aware tile sizing (all static Python ints at trace time) ----
    lane_f = _round_up(factor_dim, 128)
    lane_e = _round_up(env_num, 128)
    w_bytes = _round_up(env_num, 8) * lane_f * itemsize   # resident weight tile
    b_bytes = 8 * lane_e * 4                              # bias tile (f32)
    headroom = 2 << 20
    n_wbuf = 2            # weight/bias BlockSpecs are double-buffered by default
    cap = _vmem_capacity_bytes()
    budget = min((cap * 3) // 4, 96 << 20)   # ~96 MiB on v5e/v6e, ~48 MiB on v7x
    per_row = 2 * (lane_f + lane_e) * itemsize   # double-buffered x + out rows
    avail = budget - n_wbuf * (w_bytes + b_bytes) - headroom
    tm_cap = max(8, (avail // per_row) // 8 * 8) if avail > per_row * 8 else 8
    tm_eff = max(8, (min(tm, tm_cap, _round_up(batch, 8)) // 8) * 8)
    # v7x megacore: ensure the "parallel" row axis has >= 2 grid steps.
    if batch >= 16 and pl.cdiv(batch, tm_eff) < 2:
        tm_eff = max(8, _round_up(pl.cdiv(batch, 2), 8))

    grid = (pl.cdiv(batch, tm_eff),)

    # ---- VMEM budget hint from the actual footprint ----
    need = (2 * tm_eff * (lane_f + lane_e) * itemsize
            + n_wbuf * (w_bytes + b_bytes) + headroom)
    vmem_limit = int(min(max(need, 16 << 20), cap))

    cost = pl.CostEstimate(
        flops=2 * batch * factor_dim * env_num,
        transcendentals=batch * env_num,
        bytes_accessed=itemsize * (batch * factor_dim + env_num * factor_dim
                                   + batch * env_num) + 4 * env_num,
    )

    out = pl.pallas_call(
        _linear_logsoftmax_kernel,
        out_shape=jax.ShapeDtypeStruct((batch, env_num), cd),
        grid_spec=pltpu.PrefetchScalarGridSpec(
            num_scalar_prefetch=0,
            grid=grid,
            in_specs=[
                pl.BlockSpec((tm_eff, factor_dim), lambda i: (i, 0)),    # x rows
                pl.BlockSpec((env_num, factor_dim), lambda i: (0, 0)),   # weight
                pl.BlockSpec((1, env_num), lambda i: (0, 0)),            # bias
            ],
            out_specs=pl.BlockSpec((tm_eff, env_num), lambda i: (i, 0)),
        ),
        compiler_params=pltpu.CompilerParams(
            dimension_semantics=("parallel",),
            vmem_limit_bytes=vmem_limit,
        ),
        cost_estimate=cost,
    )(xc, wc, b_row)

    return out


def init_params(key, factor_dim, env_num):
    """Match the PyTorch module init:
    - weight (env_num, factor_dim): xavier_uniform_ -> U(-a, a),
      a = sqrt(6 / (factor_dim + env_num))
    - bias (env_num,): nn.Linear default -> U(-1/sqrt(fan_in), 1/sqrt(fan_in))
    """
    kw, kb = jax.random.split(key)
    a = (6.0 / (factor_dim + env_num)) ** 0.5
    weight = jax.random.uniform(kw, (env_num, factor_dim), jnp.float32, -a, a)
    bb = 1.0 / (factor_dim ** 0.5)
    bias = jax.random.uniform(kb, (env_num,), jnp.float32, -bb, bb)
    return weight, bias


if __name__ == "__main__":
    key = jax.random.PRNGKey(0)
    k_x, k_p = jax.random.split(key)

    # Non-multiple-of-tile batch exercises the ragged last block (masked store)
    # and the >=2-grid-step split for megacore.
    batch, factor_dim, env_num = 30, 32, 4
    x = jax.random.normal(k_x, (batch, factor_dim), jnp.float32)
    weight, bias = init_params(k_p, factor_dim, env_num)

    out = linear_logsoftmax_env_classifier(x, weight, bias)
    out = jax.block_until_ready(out)

    # Reference check in plain JAX (LogSoftmax over dim=1, same as PyTorch).
    ref = jax.nn.log_softmax(x @ weight.T + bias, axis=1)
    assert out.shape == (batch, env_num), out.shape
    assert jnp.allclose(out, ref, atol=1e-5, rtol=1e-5), "mismatch vs reference"

    print("KERNEL_OK")
</pallas_src>

<mosaic_0001>
module attributes {stable_mosaic.version = 11 : i64} {
  func.func @_linear_logsoftmax_kernel(%arg0: i32, %arg1: memref<16x32xf32, #tpu.memory_space<vmem>>, %arg2: memref<4x32xf32, #tpu.memory_space<vmem>>, %arg3: memref<1x4xf32, #tpu.memory_space<vmem>>, %arg4: memref<16x4xf32, #tpu.memory_space<vmem>>) attributes {dimension_semantics = [#tpu.dimension_semantics<parallel>], iteration_bounds = array<i64: 2>, scalar_prefetch = 0 : i64, scratch_operands = 0 : i64, tpu.core_type = #tpu.core_type<tc>, window_params = [{transform_indices = @transform_0, window_bounds = array<i64: 16, 32>}, {pipeline_mode = #tpu.pipeline_mode<synchronous>, transform_indices = @transform_1, window_bounds = array<i64: 4, 32>}, {pipeline_mode = #tpu.pipeline_mode<synchronous>, transform_indices = @transform_2, window_bounds = array<i64: 1, 4>}, {transform_indices = @transform_3, window_bounds = array<i64: 16, 4>}]} {
    %c0 = arith.constant 0 : index
    %c0_0 = arith.constant 0 : index
    %0 = vector.load %arg1[%c0, %c0_0] : memref<16x32xf32, #tpu.memory_space<vmem>>, vector<16x32xf32>
    %c0_1 = arith.constant 0 : index
    %c0_2 = arith.constant 0 : index
    %1 = vector.load %arg2[%c0_1, %c0_2] : memref<4x32xf32, #tpu.memory_space<vmem>>, vector<4x32xf32>
    %cst = arith.constant dense<0.000000e+00> : vector<16x4xf32>
    %2 = tpu.matmul %0, %1, %cst {dimension_numbers = #tpu.dot_dimension_numbers<[1], [1], [0], [0], [0, 0, 1, 0], [], []>} : vector<16x32xf32>, vector<4x32xf32>, vector<16x4xf32> -> vector<16x4xf32>
    %c0_3 = arith.constant 0 : index
    %c0_4 = arith.constant 0 : index
    %3 = vector.load %arg3[%c0_3, %c0_4] : memref<1x4xf32, #tpu.memory_space<vmem>>, vector<1x4xf32>
    %4 = vector.broadcast %3 : vector<1x4xf32> to vector<16x4xf32>
    %5 = arith.addf %2, %4 : vector<16x4xf32>
    %cst_5 = arith.constant dense<0xFF800000> : vector<16xf32>
    %6 = vector.multi_reduction <maximumf>, %5, %cst_5 [1] : vector<16x4xf32> to vector<16xf32>
    %7 = vector.shape_cast %6 : vector<16xf32> to vector<16x1xf32>
    %8 = vector.broadcast %7 : vector<16x1xf32> to vector<16x4xf32>
    %9 = arith.subf %5, %8 : vector<16x4xf32>
    %10 = math.exp %9 : vector<16x4xf32>
    %cst_6 = arith.constant dense<0.000000e+00> : vector<16xf32>
    %11 = vector.multi_reduction <add>, %10, %cst_6 [1] : vector<16x4xf32> to vector<16xf32>
    %12 = vector.shape_cast %11 : vector<16xf32> to vector<16x1xf32>
    %13 = math.log %12 : vector<16x1xf32>
    %14 = vector.broadcast %13 : vector<16x1xf32> to vector<16x4xf32>
    %15 = arith.subf %9, %14 : vector<16x4xf32>
    %c0_7 = arith.constant 0 : index
    %c0_8 = arith.constant 0 : index
    %16 = vector.load %arg4[%c0_7, %c0_8] : memref<16x4xf32, #tpu.memory_space<vmem>>, vector<16x4xf32>
    tpu.vector_store %arg4[%c0_7, %c0_8], %15 {strides = array<i32>} : memref<16x4xf32, #tpu.memory_space<vmem>>, vector<16x4xf32>,
    return
  }
  func.func @transform_0(%arg0: i32) -> (i32, i32) {
    %c0_i32 = arith.constant 0 : i32
    %c0_i32_0 = arith.constant 0 : i32
    return %arg0, %c0_i32 : i32, i32
  }
  func.func @transform_1(%arg0: i32) -> (i32, i32) {
    %c0_i32 = arith.constant 0 : i32
    %c0_i32_0 = arith.constant 0 : i32
    %c0_i32_1 = arith.constant 0 : i32
    return %c0_i32, %c0_i32_0 : i32, i32
  }
  func.func @transform_2(%arg0: i32) -> (i32, i32) {
    %c0_i32 = arith.constant 0 : i32
    %c0_i32_0 = arith.constant 0 : i32
    %c0_i32_1 = arith.constant 0 : i32
    return %c0_i32, %c0_i32_0 : i32, i32
  }
  func.func @transform_3(%arg0: i32) -> (i32, i32) {
    %c0_i32 = arith.constant 0 : i32
    %c0_i32_0 = arith.constant 0 : i32
    return %arg0, %c0_i32 : i32, i32
  }
}

</mosaic_0001>

<llo_original>
// kernel: linear_logsoftmax_env_classifier.1
$region0: #{linear_logsoftmax_env_classifier.1}
  #allocation0 [shape = 'u32[]', space=smem, size = 0x4, offset = 0x4, fixed_abs, tag = 'smem constant byte address 0x4 - core index']
  #allocation1 [shape = 'u32[144,128]{1,0:T(1,128)}', space=vmem, size = 0x12000, scoped, tag = 'internal scratch']
  %s0 = inlined_call_operand.hbm [shape: f32[30,32], index: 0, kind: input, shape index: {}]
  %s1 = inlined_call_operand.vmem [shape: f32[4,32], index: 1, kind: input, shape index: {}]
  %s2 = inlined_call_operand.vmem [shape: f32[1,4], index: 2, kind: input, shape index: {}]
  %s3 = inlined_call_operand.vmem [shape: f32[30,4], index: 3, kind: output, shape index: {}]
  %s4 = sld [smem:[#allocation0]]
  $region49: #{linear_logsoftmax_env_classifier.1} parent=0
    _
  %s6 = ssub.s32 1, %s4
  %s7 = scalar_select 0, %s6, %s4
  $region1: #{linear_logsoftmax_env_classifier.1} parent=0
    #allocation2 [shape = 'u8[16384]{0}', space=vmem, size = 0x4000, scoped, tag = 'input window, operand 0']
    #allocation3 [shape = 's32[2]{0}', space=sflag, size = 0x8, scoped, tag = 'scoped memory for linear_logsoftmax_env_classifier.1']
    %8 = vsyncpa [#allocation3], 0
    %s9 = scalar_lea.sflag [#allocation3], 1
    %10 = vsyncpa %s9, 0
    loop: start=0, step=1, limit=4
    $region2: #{linear_logsoftmax_env_classifier.1} parent=1 // loop_pre_header
      _
    $region3: #{linear_logsoftmax_env_classifier.1} parent=1 // loop_header
      %s12 = sphi 0, %s16
      %p13 = scmp.ge.s32.totalorder %s12, 4
      %s22 = sphi 0, %s24
      %s25 = sphi 0, %s22
      %s26 = sphi 0, %s25
      %s42 = sphi 0, %s26
      %s46 = sphi 0, %s46
      %s48 = sphi 0, %s46
      %s49 = sphi 0, %s48
      %s63 = sphi 0, %s49
      %s67 = sphi 0, %s67
      %s69 = sphi 0, %s67
      %s70 = sphi 0, %s69
      %s84 = sphi 0, %s70
      %s90 = sphi 0, %s92
      %s93 = sphi 0, %s90
      %s94 = sphi 0, %s93
      %s110 = sphi 0, %s94
    $region4: #{linear_logsoftmax_env_classifier.1} parent=1 // loop_header_branch
      %15 = sbr.rel (%p13) target = $region8
    $region5: #{linear_logsoftmax_env_classifier.1} parent=1 // loop_body
      %s17 = ssub.s32 %s12, 1
      %s18 = ssub.s32 %s12, 2
      %s19 = sadd.s32 %s12, 1
      %s20 = ssub.s32 %s12, %s19
      %p21 = scmp.eq.s32.totalorder %s20, 0
      %s23 = sadd.s32 %s22, 1
      %s24 = scalar_select %p21, %s22, %s23
      %p27 = pneg %p21
      %p28 = scmp.eq.s32.totalorder %s12, 1
      %p29 = por %p27, %p28
      %p30 = scmp.ne.s32.totalorder %s22, %s25
      %p31 = scmp.eq.s32.totalorder %s12, 0
      %p32 = por %p30, %p31
      %p33 = scmp.ne.s32.totalorder %s22, %s25
      %p34 = scmp.eq.s32.totalorder %s17, 1
      %p35 = por %p33, %p34
      %p36 = scmp.ne.s32.totalorder %s25, %s26
      %p37 = scmp.eq.s32.totalorder %s17, 0
      %p38 = por %p36, %p37
      %p39 = scmp.ne.s32.totalorder %s25, %s26
      %p40 = scmp.eq.s32.totalorder %s18, 1
      %p41 = por %p39, %p40
      %p43 = scmp.ne.s32.totalorder %s26, %s42
      %p44 = scmp.eq.s32.totalorder %s18, 0
      %p45 = por %p43, %p44
      %s47 = sadd.s32 %s46, 1
      %p50 = scmp.eq.s32.totalorder %s12, 1
      %p51 = scmp.ne.s32.totalorder %s46, %s48
      %p52 = scmp.eq.s32.totalorder %s12, 0
      %p53 = por %p51, %p52
      %p54 = scmp.ne.s32.totalorder %s46, %s48
      %p55 = scmp.eq.s32.totalorder %s17, 1
      %p56 = por %p54, %p55
      %p57 = scmp.ne.s32.totalorder %s48, %s49
      %p58 = scmp.eq.s32.totalorder %s17, 0
      %p59 = por %p57, %p58
      %p60 = scmp.ne.s32.totalorder %s48, %s49
      %p61 = scmp.eq.s32.totalorder %s18, 1
      %p62 = por %p60, %p61
      %p64 = scmp.ne.s32.totalorder %s49, %s63
      %p65 = scmp.eq.s32.totalorder %s18, 0
      %p66 = por %p64, %p65
      %s68 = sadd.s32 %s67, 1
      %p71 = scmp.eq.s32.totalorder %s12, 1
      %p72 = scmp.ne.s32.totalorder %s67, %s69
      %p73 = scmp.eq.s32.totalorder %s12, 0
      %p74 = por %p72, %p73
      %p75 = scmp.ne.s32.totalorder %s67, %s69
      %p76 = scmp.eq.s32.totalorder %s17, 1
      %p77 = por %p75, %p76
      %p78 = scmp.ne.s32.totalorder %s69, %s70
      %p79 = scmp.eq.s32.totalorder %s17, 0
      %p80 = por %p78, %p79
      %p81 = scmp.ne.s32.totalorder %s69, %s70
      %p82 = scmp.eq.s32.totalorder %s18, 1
      %p83 = por %p81, %p82
      %p85 = scmp.ne.s32.totalorder %s70, %s84
      %p86 = scmp.eq.s32.totalorder %s18, 0
      %p87 = por %p85, %p86
      %s88 = ssub.s32 %s12, %s19
      %p89 = scmp.eq.s32.totalorder %s88, 0
      %s91 = sadd.s32 %s90, 1
      %s92 = scalar_select %p89, %s90, %s91
      %p95 = pneg %p89
      %p96 = scmp.eq.s32.totalorder %s12, 1
      %p97 = por %p95, %p96
      %p98 = scmp.ne.s32.totalorder %s90, %s93
      %p99 = scmp.eq.s32.totalorder %s12, 0
      %p100 = por %p98, %p99
      %p101 = scmp.ne.s32.totalorder %s90, %s93
      %p102 = scmp.eq.s32.totalorder %s17, 1
      %p103 = por %p101, %p102
      %p104 = scmp.ne.s32.totalorder %s93, %s94
      %p105 = scmp.eq.s32.totalorder %s17, 0
      %p106 = por %p104, %p105
      %p107 = scmp.ne.s32.totalorder %s93, %s94
      %p108 = scmp.eq.s32.totalorder %s18, 1
      %p109 = por %p107, %p108
      %p111 = scmp.ne.s32.totalorder %s94, %s110
      %p112 = scmp.eq.s32.totalorder %s18, 0
      %p113 = por %p111, %p112
      %p114 = scmp.le.s32.totalorder 1, %s12
      %p115 = scmp.lt.s32.totalorder %s12, 3
      %p116 = pnand %p114, %p115
      %p117 = pneg %p116
      // Predicated region
      $region9: #{linear_logsoftmax_env_classifier.1} parent=5 // pred_check
        _
      $region10: #{linear_logsoftmax_env_classifier.1} parent=5 // pred_check_branch
        %119 = sbr.rel (%p116) target = $region12
      $region11: #{linear_logsoftmax_env_classifier.1} parent=5 // pred_region
        %s120 = ssub.s32 %s12, 1
        // Predicated region
        $region13: #{linear_logsoftmax_env_classifier.1} parent=11 // pred_check
          %p121 = pneg %p59
        $region14: #{linear_logsoftmax_env_classifier.1} parent=11 // pred_check_branch
          %123 = sbr.rel (%p121) target = $region16
        $region15: #{linear_logsoftmax_env_classifier.1} parent=11 // pred_region
          _
        $region16: #{linear_logsoftmax_env_classifier.1} parent=11 // pred_fallthru
          _
        // Predicated region
        $region17: #{linear_logsoftmax_env_classifier.1} parent=11 // pred_check
          %p124 = pneg %p80
        $region18: #{linear_logsoftmax_env_classifier.1} parent=11 // pred_check_branch
          %126 = sbr.rel (%p124) target = $region20
        $region19: #{linear_logsoftmax_env_classifier.1} parent=11 // pred_region
          _
        $region20: #{linear_logsoftmax_env_classifier.1} parent=11 // pred_fallthru
          _
      $region12: #{linear_logsoftmax_env_classifier.1} parent=5 // pred_fallthru
        _
      %p127 = scmp.lt.s32.totalorder %s12, 2
      // Predicated region
      $region21: #{linear_logsoftmax_env_classifier.1} parent=5 // pred_check
        %p128 = pneg %p127
      $region22: #{linear_logsoftmax_env_classifier.1} parent=5 // pred_check_branch
        %130 = sbr.rel (%p128) target = $region24
      $region23: #{linear_logsoftmax_env_classifier.1} parent=5 // pred_region
        // Predicated region
        $region25: #{linear_logsoftmax_env_classifier.1} parent=23 // pred_check
          %p131 = pneg %p32
        $region26: #{linear_logsoftmax_env_classifier.1} parent=23 // pred_check_branch
          %133 = sbr.rel (%p131) target = $region28
        $region27: #{linear_logsoftmax_env_classifier.1} parent=23 // pred_region
          %s134 = sand.u32 %s22, 1
          %s135 = scalar_lea.sflag [#allocation3], %s134
          %s136 = sand.u32 %s22, 1
          %s137 = smul.addr %s136, 16
          %s138 = scalar_lea.vmem [#allocation2], %s137
          %s139 = smul.u32 2, %s12
          %s141 = ssub.s32 256, 256
          %142 = vsyncadd %s135, %s141
          %s143 = smul.addr %s139, 128
          %s144 = scalar_lea.hbm %s0, %s143
          %s145 = sshll.u32 %s138, 4
          %s146 = int_to_ptr.vmem [resolvable:$true] %s145
          %151 = dma.hbm_to_vmem [thread:$0]  %s144, 256, %s146, %s135, 128, 128, 8
        $region28: #{linear_logsoftmax_env_classifier.1} parent=23 // pred_fallthru
          _
      $region24: #{linear_logsoftmax_env_classifier.1} parent=5 // pred_fallthru
        _
      %p152 = scmp.le.s32.totalorder 1, %s12
      %p153 = scmp.lt.s32.totalorder %s12, 3
      %p154 = pnand %p152, %p153
      %p155 = pneg %p154
      // Predicated region
      $region29: #{linear_logsoftmax_env_classifier.1} parent=5 // pred_check
        _
      $region30: #{linear_logsoftmax_env_classifier.1} parent=5 // pred_check_branch
        %157 = sbr.rel (%p154) target = $region32
      $region31: #{linear_logsoftmax_env_classifier.1} parent=5 // pred_region
        %s158 = ssub.s32 %s12, 1
        %s159 = sand.u32 %s25, 1
        %s160 = scalar_lea.sflag [#allocation3], %s159
        %s161 = sand.u32 %s25, 1
        %s162 = smul.addr %s161, 16
        %s163 = scalar_lea.vmem [#allocation2], %s162
        // Predicated region
        $region33: #{linear_logsoftmax_env_classifier.1} parent=31 // pred_check
          %p164 = pneg %p38
        $region34: #{linear_logsoftmax_env_classifier.1} parent=31 // pred_check_branch
          %166 = sbr.rel (%p164) target = $region36
        $region35: #{linear_logsoftmax_env_classifier.1} parent=31 // pred_region
          %167 = dma.done %s160, 256
        $region36: #{linear_logsoftmax_env_classifier.1} parent=31 // pred_fallthru
          _
        %s168 = sand.u32 %s25, 1
        %s169 = scalar_lea.sflag [#allocation3], %s168
        %s170 = sand.u32 %s25, 1
        %s171 = smul.addr %s170, 16
        %s172 = scalar_lea.vmem [#allocation2], %s171
        %p173 = pneg %p38
        %p174 = pneg %p35
        %p175 = pneg %p59
        %p176 = pneg %p56
        %p177 = pneg %p80
        %p178 = pneg %p77
        %p179 = pneg %p106
        %p180 = pneg %p103
        %s181 = smul.u32 2, %s17
        %p182 = scmp.lt.s32.totalorder %s181, 3
        %s183 = scalar_select %p182, %s181, 3
        %s184 = smul.addr %s183, 8
        %s185 = scalar_lea.vmem %s3, %s184
        %s186 = smul.u32 2, %s17
        %s187 = smul.u32 2, %s17
        %p188 = scmp.lt.s32.totalorder %s187, 3
        %s189 = scalar_select %p188, %s187, 3
        %s190 = smul.addr %s189, 8
        %s191 = scalar_lea.vmem %s3, %s190
        %s192 = smul.u32 2, %s17
        %v193 = vld [vmem:[%s163] sm:$0xff]
        %v194 = vld [vmem:[%s163 + $0x8] sm:$0xff]
        %v195 = vld [vmem:[%s1] sm:$0xf]
        %v196 = vld [vmem:[%s2] sm:$0x1]
        %v198 = vlaneseq
        %v199 = vshrl.u32 %v198, 7
        %v200 = vsub.s32 0, %v199
        %v201 = vrot.slane %v196, %v200
        %vm203 = vcmask 261120
        %v205 = vsel %vm203, %v193, 0
        %v208 = vsel %vm203, %v194, 0
        %v211 = vsel %vm203, %v195, 0
        %213 = vmatprep.subr.mxu0 0.0
        %214 = vmatpush1.xpose.msra.mxu0 %v211
        %215 = vmatprep.subr.mxu0 0.0
        %216 = vmatpush1.xpose.msra.mxu0 0.0
        %217 = vmatprep.subr.mxu0 0.0
        %218 = vmatpush1.xpose.msra.mxu0 0.0
        %219 = vmatprep.subr.mxu0 0.0
        %220 = vmatpush1.xpose.msra.mxu0 0.0
        %221 = vmatprep.subr.mxu0 0.0
        %222 = vmatpush1.xpose.msra.mxu0 0.0
        %223 = vmatprep.subr.mxu0 0.0
        %224 = vmatpush1.xpose.msra.mxu0 0.0
        %225 = vmatprep.subr.mxu0 0.0
        %226 = vmatpush1.xpose.msra.mxu0 0.0
        %227 = vmatprep.subr.mxu0 0.0
        %228 = vmatpush1.xpose.msra.mxu0 0.0
        %229 = vmatprep.subr.mxu0 0.0
        %230 = vmatpush1.xpose.msra.mxu0 0.0
        %231 = vmatprep.subr.mxu0 0.0
        %232 = vmatpush1.xpose.msra.mxu0 0.0
        %233 = vmatprep.subr.mxu0 0.0
        %234 = vmatpush1.xpose.msra.mxu0 0.0
        %235 = vmatprep.subr.mxu0 0.0
        %236 = vmatpush1.xpose.msra.mxu0 0.0
        %237 = vmatprep.subr.mxu0 0.0
        %238 = vmatpush1.xpose.msra.mxu0 0.0
        %239 = vmatprep.subr.mxu0 0.0
        %240 = vmatpush1.xpose.msra.mxu0 0.0
        %241 = vmatprep.subr.mxu0 0.0
        %242 = vmatpush1.xpose.msra.mxu0 0.0
        %243 = vmatprep.subr.mxu0 0.0
        %244 = vmatpush1.xpose.msra.mxu0 0.0
        %245 = vmatprep.subr.mxu0 0.0
        %246 = vmatpush1.xpose.msra.mxu0 0.0
        %247 = vmatprep.subr.mxu0 0.0
        %248 = vmatpush1.xpose.msra.mxu0 0.0
        %249 = vmatprep.subr.mxu0 0.0
        %250 = vmatpush1.xpose.msra.mxu0 0.0
        %251 = vmatprep.subr.mxu0 0.0
        %252 = vmatpush1.xpose.msra.mxu0 0.0
        %253 = vmatprep.subr.mxu0 0.0
        %254 = vmatpush1.xpose.msra.mxu0 0.0
        %255 = vmatprep.subr.mxu0 0.0
        %256 = vmatpush1.xpose.msra.mxu0 0.0
        %257 = vmatprep.subr.mxu0 0.0
        %258 = vmatpush1.xpose.msra.mxu0 0.0
        %259 = vmatprep.subr.mxu0 0.0
        %260 = vmatpush1.xpose.msra.mxu0 0.0
        %261 = vmatprep.subr.mxu0 0.0
        %262 = vmatpush1.xpose.msra.mxu0 0.0
        %263 = vmatprep.subr.mxu0 0.0
        %264 = vmatpush1.xpose.msra.mxu0 0.0
        %265 = vmatprep.subr.mxu0 0.0
        %266 = vmatpush1.xpose.msra.mxu0 0.0
        %267 = vmatprep.subr.mxu0 0.0
        %268 = vmatpush1.xpose.msra.mxu0 0.0
        %269 = vmatprep.subr.mxu0 0.0
        %270 = vmatpush1.xpose.msra.mxu0 0.0
        %271 = vmatprep.subr.mxu0 0.0
        %272 = vmatpush1.xpose.msra.mxu0 0.0
        %273 = vmatprep.subr.mxu0 0.0
        %274 = vmatpush1.xpose.msra.mxu0 0.0
        %275 = vmatprep.subr.mxu0 0.0
        %276 = vmatpush1.xpose.msra.mxu0 0.0
        %277 = vmatprep.mubr.f32.mxu0 0.0
        %278 = vmatmul.mubr.f32.gmra.mrb[0].mxu0 %v205
        %v279 = vpop.f32.mrb[0].mxu0
        %v280 = vadd.f32 %v201, %v279
        %v281 = vpop.f32.mrb[0].mxu0
        %282 = vmatprep.mubr.f32.mxu0 0.0
        %283 = vmatmul.mubr.f32.gmra.mrb[0].mxu0 %v208
        %v284 = vpop.f32.mrb[0].mxu0
        %v285 = vadd.f32 %v201, %v284
        %v286 = vpop.f32.mrb[0].mxu0
        %287 = vdwg.mxu0
        %vm288 = vcmask 31744
        %v289 = vsel %vm288, %v280, -inf
        %290 = vmax.xlane.f32.xlu0 %v289
        %v291 = vpop.xlane.xlu0 %290
        %v292 = vsel %vm288, %v285, -inf
        %293 = vmax.xlane.f32.xlu0 %v292
        %v294 = vpop.xlane.xlu0 %293
        %v295 = vsub.f32 %v280, %v291
        %v296 = vsub.f32 %v285, %v294
        %v297 = vmul.f32 %v295, 1.442695
        %v298 = vpow.pop %v297
        %v299 = vmul.f32 %v296, 1.442695
        %v300 = vpow.pop %v299
        %v301 = vsel %vm288, %v298, 0.0
        %302 = vadd.xlane.f32.xlu0 %v301
        %v303 = vpop.xlane.xlu0 %302
        %v304 = vsel %vm288, %v300, 0.0
        %305 = vadd.xlane.f32.xlu0 %v304
        %v306 = vpop.xlane.xlu0 %305
        %v307 = vlog2.pop %v303
        %v308 = vmul.f32 %v307, 0.6931472
        %v309 = vlog2.pop %v306
        %v310 = vmul.f32 %v309, 0.6931472
        %v311 = vsub.f32 %v295, %v308
        %v312 = vsub.f32 %v296, %v310
        %313 = vst.msk [vmem:[%s191] sm:$0xff] %vm288, %v311
        %314 = vst.msk [vmem:[%s191 + $0x8] sm:$0xff] %vm288, %v312
        %s315 = smul.u32 2, %s17
        %p316 = scmp.lt.s32.totalorder %s315, 3
        %s317 = scalar_select %p316, %s315, 3
        %s318 = smul.addr %s317, 8
        %s319 = scalar_lea.vmem %s3, %s318
        // Predicated region
        $region37: #{linear_logsoftmax_env_classifier.1} parent=31 // pred_check
          %p320 = pneg %p103
        $region38: #{linear_logsoftmax_env_classifier.1} parent=31 // pred_check_branch
          %322 = sbr.rel (%p320) target = $region40
        $region39: #{linear_logsoftmax_env_classifier.1} parent=31 // pred_region
          %s323 = smul.u32 2, %s17
        $region40: #{linear_logsoftmax_env_classifier.1} parent=31 // pred_fallthru
          _
      $region32: #{linear_logsoftmax_env_classifier.1} parent=5 // pred_fallthru
        _
      %p324 = scmp.le.s32.totalorder 2, %s12
      // Predicated region
      $region41: #{linear_logsoftmax_env_classifier.1} parent=5 // pred_check
        %p325 = pneg %p324
      $region42: #{linear_logsoftmax_env_classifier.1} parent=5 // pred_check_branch
        %327 = sbr.rel (%p325) target = $region44
      $region43: #{linear_logsoftmax_env_classifier.1} parent=5 // pred_region
        %s328 = ssub.s32 %s12, 2
        // Predicated region
        $region45: #{linear_logsoftmax_env_classifier.1} parent=43 // pred_check
          %p329 = pneg %p109
        $region46: #{linear_logsoftmax_env_classifier.1} parent=43 // pred_check_branch
          %331 = sbr.rel (%p329) target = $region48
        $region47: #{linear_logsoftmax_env_classifier.1} parent=43 // pred_region
          %s332 = smul.u32 2, %s18
          %p333 = scmp.lt.s32.totalorder %s332, 3
          %s334 = scalar_select %p333, %s332, 3
          %s335 = smul.addr %s334, 8
          %s336 = scalar_lea.vmem %s3, %s335
        $region48: #{linear_logsoftmax_env_classifier.1} parent=43 // pred_fallthru
          _
      $region44: #{linear_logsoftmax_env_classifier.1} parent=5 // pred_fallthru
        _
    $region6: #{linear_logsoftmax_env_classifier.1} parent=1 // loop_footer
      %s16 = sadd.s32 1, %s12
    $region7: #{linear_logsoftmax_env_classifier.1} parent=1 // loop_footer_branch
      %11 = sbr.rel target = $region3
    $region8: #{linear_logsoftmax_env_classifier.1} parent=1 // loop_exit
      _
    %337 = vsyncpa [#allocation3], 1
    %s338 = scalar_lea.sflag [#allocation3], 1
    %339 = vsyncpa %s338, 1

</llo_original>
